<compile_context>
chip_gen: v7x
topology: tpu7x:2x2x1
jax: 0.10.0
libtpu: 0.0.40
codegen_flags: <defaults>
</compile_context>

<pallas_src>
import functools

import jax
import jax.numpy as jnp
from jax.experimental import pallas as pl
from jax.experimental.pallas import tpu as pltpu


def _gem_kernel(p_ref, x_ref, o_ref, *, eps):
    p = p_ref[0, 0]                                     # scalar exponent (f32)
    x = x_ref[...].astype(jnp.float32)                  # (tile_rows, S)

    # clamp(min=eps) -> strictly positive, so log is safe.
    xc = jnp.maximum(x, eps)
    # x ** p  (traced exponent)  ==  exp(p * log(x))  -> EUP transcendentals.
    xp = jnp.exp(p * jnp.log(xc))

    # Average pool over the full spatial extent (lane-axis reduction).
    m = jnp.mean(xp, axis=-1, keepdims=True)            # (tile_rows, 1)

    # m ** (1/p)
    o_ref[...] = jnp.exp(jnp.log(m) * (1.0 / p)).astype(o_ref.dtype)


def gem(x, p, *, eps=1e-6, tile_rows=256):
    """GeM pooling.  x: (B, C, H, W), p: scalar or (1,).  Returns (B, C, 1, 1)."""
    B, C, H, W = x.shape
    rows = B * C
    S = H * W
    itemsize = jnp.dtype(x.dtype).itemsize

    x2 = x.reshape(rows, S)
    p_arr = jnp.asarray(p, jnp.float32).reshape(1, 1)

    # --- choose the row tile -------------------------------------------------
    # Big tiles amortize the ~0.35 us per-grid-step overhead; keep a multiple
    # of 8 sublanes and never more than the (8-rounded) row count.
    tile_rows = min(tile_rows, pl.cdiv(rows, 8) * 8)
    tile_rows = max(8, (tile_rows // 8) * 8)
    # Cap so the double-buffered x tile stays <= 32 MiB (fits v5e's 16 MiB
    # default scoped limit once raised, and leaves headroom on v7x's 64 MiB).
    while tile_rows > 8 and 2 * tile_rows * S * itemsize > 32 * 1024 * 1024:
        tile_rows //= 2
    tile_rows = max(8, (tile_rows // 8) * 8)

    # Pad rows so the grid divides evenly (padded rows are computed & dropped).
    rows_padded = pl.cdiv(rows, tile_rows) * tile_rows
    if rows_padded != rows:
        x2 = jnp.pad(x2, ((0, rows_padded - rows), (0, 0)))

    grid = (rows_padded // tile_rows,)

    # Explicit VMEM budget: 2x (double-buffer) x-tile + output tile + slack.
    tile_bytes = tile_rows * S * itemsize
    vmem_limit = int(min(100 * 1024 * 1024, max(8 * 1024 * 1024, 4 * tile_bytes)))

    # Advisory cost estimate (memory-bound reduction + 2 transcendentals/elem).
    cost = pl.CostEstimate(
        flops=5 * rows_padded * S,
        transcendentals=2 * rows_padded * S + 2 * rows_padded,
        bytes_accessed=rows_padded * S * itemsize + rows_padded * itemsize + 4,
    )

    out = pl.pallas_call(
        functools.partial(_gem_kernel, eps=eps),
        out_shape=jax.ShapeDtypeStruct((rows_padded, 1), x.dtype),
        grid_spec=pltpu.PrefetchScalarGridSpec(
            num_scalar_prefetch=0,
            grid=grid,
            in_specs=[
                pl.BlockSpec((1, 1), lambda i: (0, 0)),          # p (constant)
                pl.BlockSpec((tile_rows, S), lambda i: (i, 0)),  # x row tile
            ],
            out_specs=pl.BlockSpec((tile_rows, 1), lambda i: (i, 0)),
        ),
        compiler_params=pltpu.CompilerParams(
            dimension_semantics=("parallel",),
            vmem_limit_bytes=vmem_limit,
        ),
        cost_estimate=cost,
    )(p_arr, x2)

    return out[:rows].reshape(B, C, 1, 1)


def gem_reference(x, p, eps=1e-6):
    xc = jnp.maximum(x, eps)
    xp = xc ** p
    m = jnp.mean(xp, axis=(-2, -1), keepdims=True)
    return m ** (1.0 / p)


if __name__ == "__main__":
    B, C, H, W = 2, 4, 16, 16
    key = jax.random.PRNGKey(0)
    x = jax.random.normal(key, (B, C, H, W), jnp.float32)
    p = jnp.ones((1,), jnp.float32) * 3.0       # nn.Parameter(torch.ones(1) * 3)

    out = gem(x, p)
    out = jax.block_until_ready(out)

    ref = gem_reference(x, p[0])
    assert out.shape == (B, C, 1, 1), out.shape
    assert jnp.allclose(out, ref, atol=1e-5, rtol=1e-4), (
        float(jnp.max(jnp.abs(out - ref))))

    print("KERNEL_OK")
</pallas_src>

<mosaic_0001>
module attributes {stable_mosaic.version = 11 : i64} {
  func.func @_gem_kernel(%arg0: i32, %arg1: memref<1x1xf32, #tpu.memory_space<vmem>>, %arg2: memref<8x256xf32, #tpu.memory_space<vmem>>, %arg3: memref<8x1xf32, #tpu.memory_space<vmem>>) attributes {dimension_semantics = [#tpu.dimension_semantics<parallel>], iteration_bounds = array<i64: 1>, scalar_prefetch = 0 : i64, scratch_operands = 0 : i64, tpu.core_type = #tpu.core_type<tc>, window_params = [{pipeline_mode = #tpu.pipeline_mode<synchronous>, transform_indices = @transform_0, window_bounds = array<i64: 1, 1>}, {transform_indices = @transform_1, window_bounds = array<i64: 8, 256>}, {transform_indices = @transform_2, window_bounds = array<i64: 8, 1>}]} {
    %c0 = arith.constant 0 : index
    %c0_0 = arith.constant 0 : index
    %0 = vector.load %arg1[%c0, %c0_0] : memref<1x1xf32, #tpu.memory_space<vmem>>, vector<1x1xf32>
    %1 = vector.extract %0[0, 0] : f32 from vector<1x1xf32>
    %c0_1 = arith.constant 0 : index
    %c0_2 = arith.constant 0 : index
    %2 = vector.load %arg2[%c0_1, %c0_2] : memref<8x256xf32, #tpu.memory_space<vmem>>, vector<8x256xf32>
    %cst = arith.constant 9.99999997E-7 : f32
    %3 = vector.broadcast %cst : f32 to vector<8x256xf32>
    %4 = arith.maximumf %2, %3 : vector<8x256xf32>
    %5 = math.log %4 : vector<8x256xf32>
    %6 = vector.broadcast %1 : f32 to vector<8x256xf32>
    %7 = arith.mulf %6, %5 : vector<8x256xf32>
    %8 = math.exp %7 : vector<8x256xf32>
    %cst_3 = arith.constant dense<0.000000e+00> : vector<8xf32>
    %9 = vector.multi_reduction <add>, %8, %cst_3 [1] : vector<8x256xf32> to vector<8xf32>
    %10 = vector.shape_cast %9 : vector<8xf32> to vector<8x1xf32>
    %cst_4 = arith.constant 2.560000e+02 : f32
    %11 = vector.broadcast %cst_4 : f32 to vector<8x1xf32>
    %12 = arith.divf %10, %11 : vector<8x1xf32>
    %13 = math.log %12 : vector<8x1xf32>
    %cst_5 = arith.constant 1.000000e+00 : f32
    %14 = arith.divf %cst_5, %1 : f32
    %15 = vector.broadcast %14 : f32 to vector<8x1xf32>
    %16 = arith.mulf %13, %15 : vector<8x1xf32>
    %17 = math.exp %16 : vector<8x1xf32>
    %c0_6 = arith.constant 0 : index
    %c0_7 = arith.constant 0 : index
    %18 = vector.load %arg3[%c0_6, %c0_7] : memref<8x1xf32, #tpu.memory_space<vmem>>, vector<8x1xf32>
    tpu.vector_store %arg3[%c0_6, %c0_7], %17 {strides = array<i32>} : memref<8x1xf32, #tpu.memory_space<vmem>>, vector<8x1xf32>,
    return
  }
  func.func @transform_0(%arg0: i32) -> (i32, i32) {
    %c0_i32 = arith.constant 0 : i32
    %c0_i32_0 = arith.constant 0 : i32
    %c0_i32_1 = arith.constant 0 : i32
    return %c0_i32, %c0_i32_0 : i32, i32
  }
  func.func @transform_1(%arg0: i32) -> (i32, i32) {
    %c0_i32 = arith.constant 0 : i32
    %c0_i32_0 = arith.constant 0 : i32
    return %arg0, %c0_i32 : i32, i32
  }
  func.func @transform_2(%arg0: i32) -> (i32, i32) {
    %c0_i32 = arith.constant 0 : i32
    %c0_i32_0 = arith.constant 0 : i32
    return %arg0, %c0_i32 : i32, i32
  }
}

</mosaic_0001>

<llo_original>
// kernel: tpu_custom_call.1
$region0: #{tpu_custom_call.1}
  #allocation0 [shape = 'u32[]', space=smem, size = 0x4, offset = 0x4, fixed_abs, tag = 'smem constant byte address 0x4 - core index']
  #allocation1 [shape = 'u32[144,128]{1,0:T(1,128)}', space=vmem, size = 0x12000, scoped, tag = 'internal scratch']
  #allocation2 [shape = 'f32[1,1]{1,0:T(1,128)S(1)}', space=vmem, size = 0x200, scoped, tag = 'scoped memory for tpu_custom_call.1']
  %s0 = inlined_call_operand.<no memory space> [shape: f32[1,1], index: 0, kind: input, shape index: {}]
  %s1 = inlined_call_operand.hbm [shape: f32[8,256], index: 1, kind: input, shape index: {}]
  %s2 = inlined_call_operand.vmem [shape: f32[8,1], index: 2, kind: output, shape index: {}]
  %s3 = sld [smem:[#allocation0]]
  $region22: #{tpu_custom_call.1} parent=0
    _
  %s5 = ssub.s32 1, %s3
  %s6 = scalar_select 0, %s5, %s3
  %v7 = vstv %s0
  %8 = vst [vmem:[#allocation2] sm:$0x1] %v7
  $region1: #{tpu_custom_call.1} parent=0
    #allocation3 [shape = 'u8[8192]{0}', space=vmem, size = 0x2000, scoped, tag = 'input window, operand 1, single buffered']
    #allocation4 [shape = 's32[1]{0}', space=sflag, size = 0x4, scoped, tag = 'scoped memory for tpu_custom_call.1']
    %9 = vsyncpa [#allocation4], 0
    // Predicated region
    $region2: #{tpu_custom_call.1} parent=1 // pred_check
      _
    $region3: #{tpu_custom_call.1} parent=1 // pred_check_branch
      %11 = sbr.rel (0) target = $region5
    $region4: #{tpu_custom_call.1} parent=1 // pred_region
      _
    $region5: #{tpu_custom_call.1} parent=1 // pred_fallthru
      _
    // Predicated region
    $region6: #{tpu_custom_call.1} parent=1 // pred_check
      _
    $region7: #{tpu_custom_call.1} parent=1 // pred_check_branch
      %13 = sbr.rel (0) target = $region9
    $region8: #{tpu_custom_call.1} parent=1 // pred_region
      %s15 = ssub.s32 256, 256
      %16 = vsyncadd [#allocation4], %s15
      %s18 = sshll.u32 [#allocation3], 4
      %s19 = int_to_ptr.vmem [resolvable:$true] %s18
      %21 = dma.hbm_to_vmem [thread:$0]  %s1, 256, %s19, [#allocation4]
    $region9: #{tpu_custom_call.1} parent=1 // pred_fallthru
      _
    // Predicated region
    $region10: #{tpu_custom_call.1} parent=1 // pred_check
      _
    $region11: #{tpu_custom_call.1} parent=1 // pred_check_branch
      %23 = sbr.rel (0) target = $region13
    $region12: #{tpu_custom_call.1} parent=1 // pred_region
      %24 = dma.done [#allocation4], 256
    $region13: #{tpu_custom_call.1} parent=1 // pred_fallthru
      _
    %v25 = vld [vmem:[#allocation2] sm:$0x1]
    %s26 = vtos %v25
    %v27 = vld [vmem:[#allocation3] sm:$0xff]
    %v28 = vld [vmem:[#allocation3 + $0x8] sm:$0xff]
    %v29 = vmax.f32 %v27, 1e-06
    %v30 = vmax.f32 %v28, 1e-06
    %v31 = vlog2.pop %v29
    %v32 = vmul.f32 %v31, 0.6931472
    %v33 = vlog2.pop %v30
    %v34 = vmul.f32 %v33, 0.6931472
    %v35 = vstv %s26
    %v36 = vmul.f32 %v35, %v32
    %v37 = vmul.f32 %v35, %v34
    %v38 = vmul.f32 %v36, 1.442695
    %v39 = vpow.pop %v38
    %v40 = vmul.f32 %v37, 1.442695
    %v41 = vpow.pop %v40
    %v42 = vadd.f32 %v39, %v41
    %43 = vadd.xlane.f32.xlu0 %v42
    %v44 = vpop.xlane.xlu0 %43
    %v45 = vrcp.pop 256.0
    %v46 = vmul.f32 %v44, %v45
    %v47 = vlog2.pop %v46
    %v48 = vmul.f32 %v47, 0.6931472
    %v49 = vstv %s26
    %v50 = vrcp.pop %v49
    %s51 = vtos %v50
    %v52 = vstv %s51
    %v53 = vmul.f32 %v48, %v52
    %v54 = vmul.f32 %v53, 1.442695
    %v55 = vpow.pop %v54
    %vm56 = vcmask 7168
    %57 = vst.msk [vmem:[%s2] sm:$0xff] %vm56, %v55
    // Predicated region
    $region14: #{tpu_custom_call.1} parent=1 // pred_check
      _
    $region15: #{tpu_custom_call.1} parent=1 // pred_check_branch
      %59 = sbr.rel (0) target = $region17
    $region16: #{tpu_custom_call.1} parent=1 // pred_region
      _
    $region17: #{tpu_custom_call.1} parent=1 // pred_fallthru
      _
    // Predicated region
    $region18: #{tpu_custom_call.1} parent=1 // pred_check
      _
    $region19: #{tpu_custom_call.1} parent=1 // pred_check_branch
      %61 = sbr.rel (0) target = $region21
    $region20: #{tpu_custom_call.1} parent=1 // pred_region
      _
    $region21: #{tpu_custom_call.1} parent=1 // pred_fallthru
      _
    %62 = vsyncpa [#allocation4], 1

</llo_original>
